<compile_context>
chip_gen: v6e
topology: v6e:2x2x1
jax: 0.10.0
libtpu: 0.0.40
codegen_flags: <defaults>
</compile_context>

<pallas_src>
import functools

import jax
import jax.numpy as jnp
from jax.experimental import pallas as pl
from jax.experimental.pallas import tpu as pltpu


H1 = 128
H2 = 64
OUT = 1

_VMEM_BUDGET = 36 << 20   # conservative tile budget (fits v5e/v6e/v7x)
_VMEM_CAP = 48 << 20      # never request more scoped VMEM than this


def _round_up(x, m):
    return (x + m - 1) // m * m


def _vmem_bytes(tm, d_pad):
    """Rough double-buffered VMEM footprint of one grid step."""
    x_tile = tm * d_pad * 2                     # bf16 x tile
    out_tile = tm * OUT * 4                     # f32 output tile
    weights = (d_pad * H1 * 2 + H1 * 4          # w1 (bf16) + b1
               + H1 * H2 * 4 + H2 * 4           # w2 + b2
               + H2 * OUT * 4 + OUT * 4)        # w3 + b3
    return 2 * (x_tile + out_tile + weights)


def _mlp_kernel(x_ref, w1_ref, b1_ref, w2_ref, b2_ref, w3_ref, b3_ref, o_ref):
    # x_ref:  (tm, Dp) bf16      w1_ref: (Dp, 128) bf16   b1_ref: (1, 128) f32
    # w2_ref: (128, 64) f32      b2_ref: (1, 64)  f32
    # w3_ref: (64, 1)  f32       b3_ref: (1, 1)   f32
    # fc1 + ReLU  (bf16 MXU, f32 accumulate)
    h1 = jnp.dot(x_ref[...], w1_ref[...], preferred_element_type=jnp.float32)
    h1 = jnp.maximum(h1 + b1_ref[...], 0.0)

    # Dropout(0.3) in eval mode == identity.

    # fc2 + ReLU (small f32 matmul, MXU not the bottleneck)
    h2 = jnp.dot(h1, w2_ref[...], preferred_element_type=jnp.float32)
    h2 = jnp.maximum(h2 + b2_ref[...], 0.0)

    # fc3
    out = jnp.dot(h2, w3_ref[...], preferred_element_type=jnp.float32) + b3_ref[...]
    o_ref[...] = out.astype(o_ref.dtype)


@functools.partial(jax.jit, static_argnames=("tm", "training"))
def controversy_net_forward(x, params, *, tm=256, training=False):
    """x: (B, D) float32 -> (B, 1) float32."""
    if training:
        # TODO(synk): implement training-mode dropout with pltpu.prng_* before enabling.
        raise NotImplementedError("training-mode dropout not implemented in this kernel")

    w1, b1, w2, b2, w3, b3 = params
    B, D = x.shape

    # Effective batch tile: multiple of 8, no larger than (padded) batch,
    # shrunk if the VMEM estimate blows the cross-generation budget.
    tm_eff = max(8, min(tm, _round_up(B, 8)))
    tm_eff = _round_up(tm_eff, 8)
    d_pad = _round_up(max(D, 128), 128)
    while tm_eff > 8 and _vmem_bytes(tm_eff, d_pad) > _VMEM_BUDGET:
        tm_eff = max(8, _round_up(tm_eff // 2, 8))
    b_pad = _round_up(B, tm_eff)

    # Zero-pad batch and feature dims; cast the memory-dominant operands to bf16.
    xp = jnp.zeros((b_pad, d_pad), jnp.bfloat16).at[:B, :D].set(x.astype(jnp.bfloat16))
    w1p = jnp.zeros((d_pad, H1), jnp.bfloat16).at[:D, :].set(w1.astype(jnp.bfloat16))

    grid = (b_pad // tm_eff,)

    in_specs = [
        pl.BlockSpec((tm_eff, d_pad), lambda i: (i, 0)),   # x: tiled over batch
        pl.BlockSpec((d_pad, H1), lambda i: (0, 0)),       # w1: resident
        pl.BlockSpec((1, H1), lambda i: (0, 0)),           # b1
        pl.BlockSpec((H1, H2), lambda i: (0, 0)),          # w2
        pl.BlockSpec((1, H2), lambda i: (0, 0)),           # b2
        pl.BlockSpec((H2, OUT), lambda i: (0, 0)),         # w3
        pl.BlockSpec((1, OUT), lambda i: (0, 0)),          # b3
    ]
    out_specs = pl.BlockSpec((tm_eff, OUT), lambda i: (i, 0))

    weight_bytes = (d_pad * H1 * 2 + H1 * 4 + H1 * H2 * 4 + H2 * 4
                    + H2 * OUT * 4 + OUT * 4)
    cost = pl.CostEstimate(
        flops=2 * b_pad * (d_pad * H1 + H1 * H2 + H2 * OUT),
        transcendentals=0,
        bytes_accessed=b_pad * d_pad * 2 + b_pad * OUT * 4 + weight_bytes,
    )
    vmem_limit = min(max(_vmem_bytes(tm_eff, d_pad) + (16 << 20), 32 << 20), _VMEM_CAP)

    out_pad = pl.pallas_call(
        _mlp_kernel,
        out_shape=jax.ShapeDtypeStruct((b_pad, OUT), jnp.float32),
        grid_spec=pltpu.PrefetchScalarGridSpec(
            num_scalar_prefetch=0,
            grid=grid,
            in_specs=in_specs,
            out_specs=out_specs,
        ),
        compiler_params=pltpu.CompilerParams(
            dimension_semantics=("parallel",),
            vmem_limit_bytes=vmem_limit,
        ),
        cost_estimate=cost,
    )(xp, w1p, b1, w2, b2, w3, b3)

    return out_pad[:B]


def init_params(key, input_size):
    """Deterministic init mirroring nn.Linear shapes (stored as (in, out))."""
    k1, k2, k3, k4, k5, k6 = jax.random.split(key, 6)

    def linear_init(kw, kb, fan_in, fan_out):
        bound = 1.0 / jnp.sqrt(fan_in)
        w = jax.random.uniform(kw, (fan_in, fan_out), jnp.float32, -bound, bound)
        b = jax.random.uniform(kb, (1, fan_out), jnp.float32, -bound, bound)
        return w, b

    w1, b1 = linear_init(k1, k2, input_size, H1)
    w2, b2 = linear_init(k3, k4, H1, H2)
    w3, b3 = linear_init(k5, k6, H2, OUT)
    return (w1, b1, w2, b2, w3, b3)


def reference_forward(x, params):
    w1, b1, w2, b2, w3, b3 = params
    h1 = jnp.maximum(x @ w1 + b1, 0.0)
    h2 = jnp.maximum(h1 @ w2 + b2, 0.0)
    return h2 @ w3 + b3


if __name__ == "__main__":
    key = jax.random.PRNGKey(0)
    k_x, k_p, k_x2 = jax.random.split(key, 3)

    # Small demo (exercises the small-batch tile cap and D-padding to 128).
    batch, input_size = 8, 32
    x = jax.random.normal(k_x, (batch, input_size), dtype=jnp.float32)
    params = init_params(k_p, input_size)

    out = jax.block_until_ready(controversy_net_forward(x, params))
    ref = reference_forward(x, params)
    assert out.shape == (batch, 1), out.shape
    assert jnp.allclose(out, ref, atol=5e-2, rtol=5e-2), (
        f"max abs err {jnp.max(jnp.abs(out - ref))}"
    )

    # Non-divisible batch / feature dims (exercises batch padding + large tile path).
    batch2, input2 = 300, 40
    x2 = jax.random.normal(k_x2, (batch2, input2), dtype=jnp.float32)
    params2 = init_params(k_p, input2)

    out2 = jax.block_until_ready(controversy_net_forward(x2, params2))
    ref2 = reference_forward(x2, params2)
    assert out2.shape == (batch2, 1), out2.shape
    assert jnp.allclose(out2, ref2, atol=5e-2, rtol=5e-2), (
        f"max abs err {jnp.max(jnp.abs(out2 - ref2))}"
    )

    print("KERNEL_OK")
</pallas_src>

<mosaic_0001>
module attributes {stable_mosaic.version = 11 : i64} {
  func.func @_mlp_kernel(%arg0: i32, %arg1: memref<8x128xbf16, #tpu.memory_space<vmem>>, %arg2: memref<128x128xbf16, #tpu.memory_space<vmem>>, %arg3: memref<1x128xf32, #tpu.memory_space<vmem>>, %arg4: memref<128x64xf32, #tpu.memory_space<vmem>>, %arg5: memref<1x64xf32, #tpu.memory_space<vmem>>, %arg6: memref<64x1xf32, #tpu.memory_space<vmem>>, %arg7: memref<1x1xf32, #tpu.memory_space<vmem>>, %arg8: memref<8x1xf32, #tpu.memory_space<vmem>>) attributes {dimension_semantics = [#tpu.dimension_semantics<parallel>], iteration_bounds = array<i64: 1>, scalar_prefetch = 0 : i64, scratch_operands = 0 : i64, tpu.core_type = #tpu.core_type<tc>, window_params = [{transform_indices = @transform_0, window_bounds = array<i64: 8, 128>}, {pipeline_mode = #tpu.pipeline_mode<synchronous>, transform_indices = @transform_1, window_bounds = array<i64: 128, 128>}, {pipeline_mode = #tpu.pipeline_mode<synchronous>, transform_indices = @transform_2, window_bounds = array<i64: 1, 128>}, {pipeline_mode = #tpu.pipeline_mode<synchronous>, transform_indices = @transform_3, window_bounds = array<i64: 128, 64>}, {pipeline_mode = #tpu.pipeline_mode<synchronous>, transform_indices = @transform_4, window_bounds = array<i64: 1, 64>}, {pipeline_mode = #tpu.pipeline_mode<synchronous>, transform_indices = @transform_5, window_bounds = array<i64: 64, 1>}, {pipeline_mode = #tpu.pipeline_mode<synchronous>, transform_indices = @transform_6, window_bounds = array<i64: 1, 1>}, {transform_indices = @transform_7, window_bounds = array<i64: 8, 1>}]} {
    %c0 = arith.constant 0 : index
    %c0_0 = arith.constant 0 : index
    %0 = vector.load %arg1[%c0, %c0_0] : memref<8x128xbf16, #tpu.memory_space<vmem>>, vector<8x128xbf16>
    %c0_1 = arith.constant 0 : index
    %c0_2 = arith.constant 0 : index
    %1 = vector.load %arg2[%c0_1, %c0_2] : memref<128x128xbf16, #tpu.memory_space<vmem>>, vector<128x128xbf16>
    %cst = arith.constant dense<0.000000e+00> : vector<8x128xf32>
    %2 = tpu.matmul %0, %1, %cst {dimension_numbers = #tpu.dot_dimension_numbers<[1], [0], [0], [1], [0, 0, 1, 1], [], []>} : vector<8x128xbf16>, vector<128x128xbf16>, vector<8x128xf32> -> vector<8x128xf32>
    %c0_3 = arith.constant 0 : index
    %c0_4 = arith.constant 0 : index
    %3 = vector.load %arg3[%c0_3, %c0_4] : memref<1x128xf32, #tpu.memory_space<vmem>>, vector<1x128xf32>
    %4 = vector.broadcast %3 : vector<1x128xf32> to vector<8x128xf32>
    %5 = arith.addf %2, %4 : vector<8x128xf32>
    %cst_5 = arith.constant 0.000000e+00 : f32
    %6 = vector.broadcast %cst_5 : f32 to vector<8x128xf32>
    %7 = arith.maximumf %5, %6 : vector<8x128xf32>
    %c0_6 = arith.constant 0 : index
    %c0_7 = arith.constant 0 : index
    %8 = vector.load %arg4[%c0_6, %c0_7] : memref<128x64xf32, #tpu.memory_space<vmem>>, vector<128x64xf32>
    %cst_8 = arith.constant dense<0.000000e+00> : vector<8x64xf32>
    %9 = tpu.matmul %7, %8, %cst_8 {dimension_numbers = #tpu.dot_dimension_numbers<[1], [0], [0], [1], [0, 0, 1, 1], [], []>} : vector<8x128xf32>, vector<128x64xf32>, vector<8x64xf32> -> vector<8x64xf32>
    %c0_9 = arith.constant 0 : index
    %c0_10 = arith.constant 0 : index
    %10 = vector.load %arg5[%c0_9, %c0_10] : memref<1x64xf32, #tpu.memory_space<vmem>>, vector<1x64xf32>
    %11 = vector.broadcast %10 : vector<1x64xf32> to vector<8x64xf32>
    %12 = arith.addf %9, %11 : vector<8x64xf32>
    %cst_11 = arith.constant 0.000000e+00 : f32
    %13 = vector.broadcast %cst_11 : f32 to vector<8x64xf32>
    %14 = arith.maximumf %12, %13 : vector<8x64xf32>
    %c0_12 = arith.constant 0 : index
    %c0_13 = arith.constant 0 : index
    %15 = vector.load %arg6[%c0_12, %c0_13] : memref<64x1xf32, #tpu.memory_space<vmem>>, vector<64x1xf32>
    %cst_14 = arith.constant dense<0.000000e+00> : vector<8x1xf32>
    %16 = tpu.matmul %14, %15, %cst_14 {dimension_numbers = #tpu.dot_dimension_numbers<[1], [0], [0], [1], [0, 0, 1, 1], [], []>} : vector<8x64xf32>, vector<64x1xf32>, vector<8x1xf32> -> vector<8x1xf32>
    %c0_15 = arith.constant 0 : index
    %c0_16 = arith.constant 0 : index
    %17 = vector.load %arg7[%c0_15, %c0_16] : memref<1x1xf32, #tpu.memory_space<vmem>>, vector<1x1xf32>
    %18 = vector.broadcast %17 : vector<1x1xf32> to vector<8x1xf32>
    %19 = arith.addf %16, %18 : vector<8x1xf32>
    %c0_17 = arith.constant 0 : index
    %c0_18 = arith.constant 0 : index
    %20 = vector.load %arg8[%c0_17, %c0_18] : memref<8x1xf32, #tpu.memory_space<vmem>>, vector<8x1xf32>
    tpu.vector_store %arg8[%c0_17, %c0_18], %19 {strides = array<i32>} : memref<8x1xf32, #tpu.memory_space<vmem>>, vector<8x1xf32>,
    return
  }
  func.func @transform_0(%arg0: i32) -> (i32, i32) {
    %c0_i32 = arith.constant 0 : i32
    %c0_i32_0 = arith.constant 0 : i32
    return %arg0, %c0_i32 : i32, i32
  }
  func.func @transform_1(%arg0: i32) -> (i32, i32) {
    %c0_i32 = arith.constant 0 : i32
    %c0_i32_0 = arith.constant 0 : i32
    %c0_i32_1 = arith.constant 0 : i32
    return %c0_i32, %c0_i32_0 : i32, i32
  }
  func.func @transform_2(%arg0: i32) -> (i32, i32) {
    %c0_i32 = arith.constant 0 : i32
    %c0_i32_0 = arith.constant 0 : i32
    %c0_i32_1 = arith.constant 0 : i32
    return %c0_i32, %c0_i32_0 : i32, i32
  }
  func.func @transform_3(%arg0: i32) -> (i32, i32) {
    %c0_i32 = arith.constant 0 : i32
    %c0_i32_0 = arith.constant 0 : i32
    %c0_i32_1 = arith.constant 0 : i32
    return %c0_i32, %c0_i32_0 : i32, i32
  }
  func.func @transform_4(%arg0: i32) -> (i32, i32) {
    %c0_i32 = arith.constant 0 : i32
    %c0_i32_0 = arith.constant 0 : i32
    %c0_i32_1 = arith.constant 0 : i32
    return %c0_i32, %c0_i32_0 : i32, i32
  }
  func.func @transform_5(%arg0: i32) -> (i32, i32) {
    %c0_i32 = arith.constant 0 : i32
    %c0_i32_0 = arith.constant 0 : i32
    %c0_i32_1 = arith.constant 0 : i32
    return %c0_i32, %c0_i32_0 : i32, i32
  }
  func.func @transform_6(%arg0: i32) -> (i32, i32) {
    %c0_i32 = arith.constant 0 : i32
    %c0_i32_0 = arith.constant 0 : i32
    %c0_i32_1 = arith.constant 0 : i32
    return %c0_i32, %c0_i32_0 : i32, i32
  }
  func.func @transform_7(%arg0: i32) -> (i32, i32) {
    %c0_i32 = arith.constant 0 : i32
    %c0_i32_0 = arith.constant 0 : i32
    return %arg0, %c0_i32 : i32, i32
  }
}

</mosaic_0001>

<llo_original>
// kernel: controversy_net_forward.1
$region0: #{controversy_net_forward.1}
  #allocation0 [shape = 'u32[]', space=smem, size = 0x4, offset = 0x4, fixed_abs, tag = 'smem constant byte address 0x4 - core index']
  #allocation1 [shape = 'u32[144,128]{1,0:T(1,128)}', space=vmem, size = 0x12000, scoped, tag = 'internal scratch']
  #allocation2 [shape = 'f32[1,1]{1,0:T(1,128)S(1)}', space=vmem, size = 0x200, scoped, tag = 'scoped memory for controversy_net_forward.1']
  %s0 = inlined_call_operand.vmem [shape: bf16[8,128], index: 0, kind: input, shape index: {}]
  %s1 = inlined_call_operand.vmem [shape: bf16[128,128], index: 1, kind: input, shape index: {}]
  %s2 = inlined_call_operand.vmem [shape: f32[1,128], index: 2, kind: input, shape index: {}]
  %s3 = inlined_call_operand.vmem [shape: f32[128,64], index: 3, kind: input, shape index: {}]
  %s4 = inlined_call_operand.vmem [shape: f32[1,64], index: 4, kind: input, shape index: {}]
  %s5 = inlined_call_operand.vmem [shape: f32[64,1], index: 5, kind: input, shape index: {}]
  %s6 = inlined_call_operand.<no memory space> [shape: f32[1,1], index: 6, kind: input, shape index: {}]
  %s7 = inlined_call_operand.vmem [shape: f32[8,1], index: 7, kind: output, shape index: {}]
  %s8 = sld [smem:[#allocation0]]
  $region38: #{controversy_net_forward.1} parent=0
    _
  %s10 = ssub.s32 1, %s8
  %s11 = scalar_select 0, %s10, %s8
  %v12 = vstv %s6
  %13 = vst [vmem:[#allocation2] sm:$0x1] %v12
  // Predicated region
  $region2: #{controversy_net_forward.1} parent=0 // pred_check
    _
  $region3: #{controversy_net_forward.1} parent=0 // pred_check_branch
    %15 = sbr.rel (0) target = $region5
  $region4: #{controversy_net_forward.1} parent=0 // pred_region
    _
  $region5: #{controversy_net_forward.1} parent=0 // pred_fallthru
    _
  // Predicated region
  $region6: #{controversy_net_forward.1} parent=0 // pred_check
    _
  $region7: #{controversy_net_forward.1} parent=0 // pred_check_branch
    %17 = sbr.rel (0) target = $region9
  $region8: #{controversy_net_forward.1} parent=0 // pred_region
    _
  $region9: #{controversy_net_forward.1} parent=0 // pred_fallthru
    _
  // Predicated region
  $region10: #{controversy_net_forward.1} parent=0 // pred_check
    _
  $region11: #{controversy_net_forward.1} parent=0 // pred_check_branch
    %19 = sbr.rel (0) target = $region13
  $region12: #{controversy_net_forward.1} parent=0 // pred_region
    _
  $region13: #{controversy_net_forward.1} parent=0 // pred_fallthru
    _
  // Predicated region
  $region14: #{controversy_net_forward.1} parent=0 // pred_check
    _
  $region15: #{controversy_net_forward.1} parent=0 // pred_check_branch
    %21 = sbr.rel (0) target = $region17
  $region16: #{controversy_net_forward.1} parent=0 // pred_region
    _
  $region17: #{controversy_net_forward.1} parent=0 // pred_fallthru
    _
  // Predicated region
  $region18: #{controversy_net_forward.1} parent=0 // pred_check
    _
  $region19: #{controversy_net_forward.1} parent=0 // pred_check_branch
    %23 = sbr.rel (0) target = $region21
  $region20: #{controversy_net_forward.1} parent=0 // pred_region
    _
  $region21: #{controversy_net_forward.1} parent=0 // pred_fallthru
    _
  // Predicated region
  $region22: #{controversy_net_forward.1} parent=0 // pred_check
    _
  $region23: #{controversy_net_forward.1} parent=0 // pred_check_branch
    %25 = sbr.rel (0) target = $region25
  $region24: #{controversy_net_forward.1} parent=0 // pred_region
    _
  $region25: #{controversy_net_forward.1} parent=0 // pred_fallthru
    _
  // Predicated region
  $region26: #{controversy_net_forward.1} parent=0 // pred_check
    _
  $region27: #{controversy_net_forward.1} parent=0 // pred_check_branch
    %27 = sbr.rel (0) target = $region29
  $region28: #{controversy_net_forward.1} parent=0 // pred_region
    _
  $region29: #{controversy_net_forward.1} parent=0 // pred_fallthru
    _
  %v29 = vld [vmem:[%s0] sm:$0xf]
  %v30 = vld [vmem:[%s1] sm:$0xf]
  %v31 = vld [vmem:[%s1 + $0x4] sm:$0xf]
  %v32 = vld [vmem:[%s1 + $0x8] sm:$0xf]
  %v33 = vld [vmem:[%s1 + $0xc] sm:$0xf]
  %v34 = vld [vmem:[%s1 + $0x10] sm:$0xf]
  %v35 = vld [vmem:[%s1 + $0x14] sm:$0xf]
  %v36 = vld [vmem:[%s1 + $0x18] sm:$0xf]
  %v37 = vld [vmem:[%s1 + $0x1c] sm:$0xf]
  %v38 = vld [vmem:[%s1 + $0x20] sm:$0xf]
  %v39 = vld [vmem:[%s1 + $0x24] sm:$0xf]
  %v40 = vld [vmem:[%s1 + $0x28] sm:$0xf]
  %v41 = vld [vmem:[%s1 + $0x2c] sm:$0xf]
  %v42 = vld [vmem:[%s1 + $0x30] sm:$0xf]
  %v43 = vld [vmem:[%s1 + $0x34] sm:$0xf]
  %v44 = vld [vmem:[%s1 + $0x38] sm:$0xf]
  %v45 = vld [vmem:[%s1 + $0x3c] sm:$0xf]
  %v46 = vld [vmem:[%s2] sm:$0x1]
  %v48 = vlaneseq
  %v49 = vshrl.u32 %v48, 7
  %v50 = vsub.s32 0, %v49
  %v51 = vrot.slane %v46, %v50
  %v69 = vunpack.c.l.b16 %v30
  %v70 = vunpack.c.l.b16 %v31
  %v71 = vunpack.c.l.b16 %v32
  %v72 = vunpack.c.l.b16 %v33
  %v73 = vunpack.c.l.b16 %v34
  %v74 = vunpack.c.l.b16 %v35
  %v75 = vunpack.c.l.b16 %v36
  %v76 = vunpack.c.l.b16 %v37
  %v77 = vunpack.c.l.b16 %v38
  %v78 = vunpack.c.l.b16 %v39
  %v79 = vunpack.c.l.b16 %v40
  %v80 = vunpack.c.l.b16 %v41
  %v81 = vunpack.c.l.b16 %v42
  %v82 = vunpack.c.l.b16 %v43
  %v83 = vunpack.c.l.b16 %v44
  %v84 = vunpack.c.l.b16 %v45
  %v85 = vpack.c.b16 %v70, %v69
  %v86 = vpack.c.b16 %v72, %v71
  %v87 = vpack.c.b16 %v74, %v73
  %v88 = vpack.c.b16 %v76, %v75
  %v89 = vpack.c.b16 %v78, %v77
  %v90 = vpack.c.b16 %v80, %v79
  %v91 = vpack.c.b16 %v82, %v81
  %v92 = vpack.c.b16 %v84, %v83
  %101 = vmatprep.subr.bf16.mxu0 0
  %102 = vmatpush1.bf16.msra.mxu0 %v92
  %103 = vmatprep.subr.bf16.mxu0 0
  %104 = vmatpush1.bf16.msra.mxu0 %v91
  %105 = vmatprep.subr.bf16.mxu0 0
  %106 = vmatpush1.bf16.msra.mxu0 %v90
  %107 = vmatprep.subr.bf16.mxu0 0
  %108 = vmatpush1.bf16.msra.mxu0 %v89
  %109 = vmatprep.subr.bf16.mxu0 0
  %110 = vmatpush1.bf16.msra.mxu0 %v88
  %111 = vmatprep.subr.bf16.mxu0 0
  %112 = vmatpush1.bf16.msra.mxu0 %v87
  %113 = vmatprep.subr.bf16.mxu0 0
  %114 = vmatpush1.bf16.msra.mxu0 %v86
  %115 = vmatprep.subr.bf16.mxu0 0
  %116 = vmatpush1.bf16.msra.mxu0 %v85
  %117 = vmatprep.subr.bf16.mxu0 0
  %118 = vmatpush2.bf16.msra.mxu0 0
  %119 = vmatprep.subr.bf16.mxu0 0
  %120 = vmatpush2.bf16.msra.mxu0 0
  %121 = vmatprep.subr.bf16.mxu0 0
  %122 = vmatpush2.bf16.msra.mxu0 0
  %123 = vmatprep.subr.bf16.mxu0 0
  %124 = vmatpush2.bf16.msra.mxu0 0
  %125 = vmatprep.subr.bf16.mxu0 0
  %126 = vmatpush2.bf16.msra.mxu0 0
  %127 = vmatprep.subr.bf16.mxu0 0
  %128 = vmatpush2.bf16.msra.mxu0 0
  %129 = vmatprep.subr.bf16.mxu0 0
  %130 = vmatpush2.bf16.msra.mxu0 0
  %131 = vmatprep.subr.bf16.mxu0 0
  %132 = vmatpush2.bf16.msra.mxu0 0
  %133 = vmatprep.mubr.bf16.mxu0 0
  %134 = vmatmul.mubr.bf16.gmra.mxu0 %v29
  %v135 = vpop.f32.mrf.mxu0
  %v136 = vadd.f32 %v51, %v135
  %v137 = vpop.f32.mrf.mxu0
  %v138 = vpop.f32.mrf.mxu0
  %v139 = vpop.f32.mrf.mxu0
  %140 = vdwg.mxu0
  %v141 = vmax.f32 %v136, 0.0
  %v142 = vld [vmem:[%s3] sm:$0xff]
  %v143 = vld [vmem:[%s3 + $0x8] sm:$0xff]
  %v144 = vld [vmem:[%s3 + $0x10] sm:$0xff]
  %v145 = vld [vmem:[%s3 + $0x18] sm:$0xff]
  %v146 = vld [vmem:[%s3 + $0x20] sm:$0xff]
  %v147 = vld [vmem:[%s3 + $0x28] sm:$0xff]
  %v148 = vld [vmem:[%s3 + $0x30] sm:$0xff]
  %v149 = vld [vmem:[%s3 + $0x38] sm:$0xff]
  %v150 = vld [vmem:[%s3 + $0x40] sm:$0xff]
  %v151 = vld [vmem:[%s3 + $0x48] sm:$0xff]
  %v152 = vld [vmem:[%s3 + $0x50] sm:$0xff]
  %v153 = vld [vmem:[%s3 + $0x58] sm:$0xff]
  %v154 = vld [vmem:[%s3 + $0x60] sm:$0xff]
  %v155 = vld [vmem:[%s3 + $0x68] sm:$0xff]
  %v156 = vld [vmem:[%s3 + $0x70] sm:$0xff]
  %v157 = vld [vmem:[%s3 + $0x78] sm:$0xff]
  %v158 = vld [vmem:[%s4] sm:$0x1]
  %v160 = vlaneseq
  %v161 = vshrl.u32 %v160, 7
  %v162 = vsub.s32 0, %v161
  %v163 = vrot.slane %v158, %v162
  %165 = vmatprep.subr.mxu0 0.0
  %166 = vmatpush1.msra.mxu0 %v157
  %167 = vmatprep.subr.mxu0 0.0
  %168 = vmatpush1.msra.mxu0 %v156
  %169 = vmatprep.subr.mxu0 0.0
  %170 = vmatpush1.msra.mxu0 %v155
  %171 = vmatprep.subr.mxu0 0.0
  %172 = vmatpush1.msra.mxu0 %v154
  %173 = vmatprep.subr.mxu0 0.0
  %174 = vmatpush1.msra.mxu0 %v153
  %175 = vmatprep.subr.mxu0 0.0
  %176 = vmatpush1.msra.mxu0 %v152
  %177 = vmatprep.subr.mxu0 0.0
  %178 = vmatpush1.msra.mxu0 %v151
  %179 = vmatprep.subr.mxu0 0.0
  %180 = vmatpush1.msra.mxu0 %v150
  %181 = vmatprep.subr.mxu0 0.0
  %182 = vmatpush1.msra.mxu0 %v149
  %183 = vmatprep.subr.mxu0 0.0
  %184 = vmatpush1.msra.mxu0 %v148
  %185 = vmatprep.subr.mxu0 0.0
  %186 = vmatpush1.msra.mxu0 %v147
  %187 = vmatprep.subr.mxu0 0.0
  %188 = vmatpush1.msra.mxu0 %v146
  %189 = vmatprep.subr.mxu0 0.0
  %190 = vmatpush1.msra.mxu0 %v145
  %191 = vmatprep.subr.mxu0 0.0
  %192 = vmatpush1.msra.mxu0 %v144
  %193 = vmatprep.subr.mxu0 0.0
  %194 = vmatpush1.msra.mxu0 %v143
  %195 = vmatprep.subr.mxu0 0.0
  %196 = vmatpush1.msra.mxu0 %v142
  %197 = vmatprep.subr.mxu0 0.0
  %198 = vmatpush2.msra.mxu0 0.0
  %199 = vmatprep.subr.mxu0 0.0
  %200 = vmatpush2.msra.mxu0 0.0
  %201 = vmatprep.subr.mxu0 0.0
  %202 = vmatpush2.msra.mxu0 0.0
  %203 = vmatprep.subr.mxu0 0.0
  %204 = vmatpush2.msra.mxu0 0.0
  %205 = vmatprep.subr.mxu0 0.0
  %206 = vmatpush2.msra.mxu0 0.0
  %207 = vmatprep.subr.mxu0 0.0
  %208 = vmatpush2.msra.mxu0 0.0
  %209 = vmatprep.subr.mxu0 0.0
  %210 = vmatpush2.msra.mxu0 0.0
  %211 = vmatprep.subr.mxu0 0.0
  %212 = vmatpush2.msra.mxu0 0.0
  %213 = vmatprep.subr.mxu0 0.0
  %214 = vmatpush2.msra.mxu0 0.0
  %215 = vmatprep.subr.mxu0 0.0
  %216 = vmatpush2.msra.mxu0 0.0
  %217 = vmatprep.subr.mxu0 0.0
  %218 = vmatpush2.msra.mxu0 0.0
  %219 = vmatprep.subr.mxu0 0.0
  %220 = vmatpush2.msra.mxu0 0.0
  %221 = vmatprep.subr.mxu0 0.0
  %222 = vmatpush2.msra.mxu0 0.0
  %223 = vmatprep.subr.mxu0 0.0
  %224 = vmatpush2.msra.mxu0 0.0
  %225 = vmatprep.subr.mxu0 0.0
  %226 = vmatpush2.msra.mxu0 0.0
  %227 = vmatprep.subr.mxu0 0.0
  %228 = vmatpush2.msra.mxu0 0.0
  %229 = vmatprep.mubr.f32.mxu0 0.0
  %230 = vmatmul.mubr.f32.gmra.mxu0 %v141
  %v231 = vpop.f32.mrf.mxu0
  %v232 = vadd.f32 %v163, %v231
  %v233 = vpop.f32.mrf.mxu0
  %234 = vdwg.mxu0
  %v235 = vmax.f32 %v232, 0.0
  %v236 = vld [vmem:[%s5] sm:$0xff]
  %v237 = vld [vmem:[%s5 + $0x8] sm:$0xff]
  %v238 = vld [vmem:[%s5 + $0x10] sm:$0xff]
  %v239 = vld [vmem:[%s5 + $0x18] sm:$0xff]
  %v240 = vld [vmem:[%s5 + $0x20] sm:$0xff]
  %v241 = vld [vmem:[%s5 + $0x28] sm:$0xff]
  %v242 = vld [vmem:[%s5 + $0x30] sm:$0xff]
  %v243 = vld [vmem:[%s5 + $0x38] sm:$0xff]
  %v244 = vld [vmem:[#allocation2] sm:$0x1]
  %v246 = vlaneseq
  %v247 = vshrl.u32 %v246, 7
  %v248 = vsub.s32 0, %v247
  %v249 = vrot.slane %v244, %v248
  %vm251 = vcmask 523264
  %v253 = vsel %vm251, %v235, 0
  %255 = vmatprep.subr.mxu0 0.0
  %256 = vmatpush1.msra.mxu0 0.0
  %257 = vmatprep.subr.mxu0 0.0
  %258 = vmatpush1.msra.mxu0 0.0
  %259 = vmatprep.subr.mxu0 0.0
  %260 = vmatpush1.msra.mxu0 0.0
  %261 = vmatprep.subr.mxu0 0.0
  %262 = vmatpush1.msra.mxu0 0.0
  %263 = vmatprep.subr.mxu0 0.0
  %264 = vmatpush1.msra.mxu0 0.0
  %265 = vmatprep.subr.mxu0 0.0
  %266 = vmatpush1.msra.mxu0 0.0
  %267 = vmatprep.subr.mxu0 0.0
  %268 = vmatpush1.msra.mxu0 0.0
  %269 = vmatprep.subr.mxu0 0.0
  %270 = vmatpush1.msra.mxu0 0.0
  %271 = vmatprep.subr.mxu0 0.0
  %272 = vmatpush1.msra.mxu0 %v243
  %273 = vmatprep.subr.mxu0 0.0
  %274 = vmatpush1.msra.mxu0 %v242
  %275 = vmatprep.subr.mxu0 0.0
  %276 = vmatpush1.msra.mxu0 %v241
  %277 = vmatprep.subr.mxu0 0.0
  %278 = vmatpush1.msra.mxu0 %v240
  %279 = vmatprep.subr.mxu0 0.0
  %280 = vmatpush1.msra.mxu0 %v239
  %281 = vmatprep.subr.mxu0 0.0
  %282 = vmatpush1.msra.mxu0 %v238
  %283 = vmatprep.subr.mxu0 0.0
  %284 = vmatpush1.msra.mxu0 %v237
  %285 = vmatprep.subr.mxu0 0.0
  %286 = vmatpush1.msra.mxu0 %v236
  %287 = vmatprep.subr.mxu0 0.0
  %288 = vmatpush2.msra.mxu0 0.0
  %289 = vmatprep.subr.mxu0 0.0
  %290 = vmatpush2.msra.mxu0 0.0
  %291 = vmatprep.subr.mxu0 0.0
  %292 = vmatpush2.msra.mxu0 0.0
  %293 = vmatprep.subr.mxu0 0.0
  %294 = vmatpush2.msra.mxu0 0.0
  %295 = vmatprep.subr.mxu0 0.0
  %296 = vmatpush2.msra.mxu0 0.0
  %297 = vmatprep.subr.mxu0 0.0
  %298 = vmatpush2.msra.mxu0 0.0
  %299 = vmatprep.subr.mxu0 0.0
  %300 = vmatpush2.msra.mxu0 0.0
  %301 = vmatprep.subr.mxu0 0.0
  %302 = vmatpush2.msra.mxu0 0.0
  %303 = vmatprep.subr.mxu0 0.0
  %304 = vmatpush2.msra.mxu0 0.0
  %305 = vmatprep.subr.mxu0 0.0
  %306 = vmatpush2.msra.mxu0 0.0
  %307 = vmatprep.subr.mxu0 0.0
  %308 = vmatpush2.msra.mxu0 0.0
  %309 = vmatprep.subr.mxu0 0.0
  %310 = vmatpush2.msra.mxu0 0.0
  %311 = vmatprep.subr.mxu0 0.0
  %312 = vmatpush2.msra.mxu0 0.0
  %313 = vmatprep.subr.mxu0 0.0
  %314 = vmatpush2.msra.mxu0 0.0
  %315 = vmatprep.subr.mxu0 0.0
  %316 = vmatpush2.msra.mxu0 0.0
  %317 = vmatprep.subr.mxu0 0.0
  %318 = vmatpush2.msra.mxu0 0.0
  %319 = vmatprep.mubr.f32.mxu0 0.0
  %320 = vmatmul.mubr.f32.gmra.mxu0 %v253
  %v321 = vpop.f32.mrf.mxu0
  %v322 = vadd.f32 %v249, %v321
  %v323 = vpop.f32.mrf.mxu0
  %324 = vdwg.mxu0
  %vm325 = vcmask 7168
  %326 = vst.msk [vmem:[%s7] sm:$0xff] %vm325, %v322
  // Predicated region
  $region30: #{controversy_net_forward.1} parent=0 // pred_check
    _
  $region31: #{controversy_net_forward.1} parent=0 // pred_check_branch
    %328 = sbr.rel (0) target = $region33
  $region32: #{controversy_net_forward.1} parent=0 // pred_region
    _
  $region33: #{controversy_net_forward.1} parent=0 // pred_fallthru
    _
  // Predicated region
  $region34: #{controversy_net_forward.1} parent=0 // pred_check
    _
  $region35: #{controversy_net_forward.1} parent=0 // pred_check_branch
    %330 = sbr.rel (0) target = $region37
  $region36: #{controversy_net_forward.1} parent=0 // pred_region
    _
  $region37: #{controversy_net_forward.1} parent=0 // pred_fallthru
    _

</llo_original>
